<compile_context>
chip_gen: v7x
topology: tpu7x:2x2x1
jax: 0.10.0
libtpu: 0.0.40
codegen_flags: <defaults>
</compile_context>

<pallas_src>
import functools

import jax
import jax.numpy as jnp
from jax.experimental import pallas as pl
from jax.experimental.pallas import tpu as pltpu

K_RAW = 16 * 1 * 23       # 368 flattened conv features (full last dim of x_flat)
TB_MAX = 2048             # batch tile (sweep 2048-4096 on real workloads)
NEG_MASK = -1.0e30        # "-inf" for padded class columns (safe finite value)


def classifier_kernel(x_ref, w_ref, b_ref, o_ref):
    # MXU matmul; f32 accumulate regardless of input dtype (f32 or bf16 x).
    logits = jnp.dot(x_ref[...], w_ref[...],
                     preferred_element_type=jnp.float32)
    # Bias add; padded class columns carry -1e30 so they vanish in the softmax.
    logits = logits + b_ref[...]
    # Numerically-stable log-softmax over the (padded, lane-dense) class axis.
    m = jnp.max(logits, axis=-1, keepdims=True)
    shifted = logits - m
    lse = jnp.log(jnp.sum(jnp.exp(shifted), axis=-1, keepdims=True))
    o_ref[...] = (shifted - lse).astype(o_ref.dtype)


def prepare_classifier_params(conv_w, conv_b):
    """One-time parameter prep (do NOT call per forward).

    conv_w: (num_classes, 16, 1, 23)  PyTorch Conv2d weight layout
    conv_b: (num_classes,)
    returns:
      w_pad: (K_RAW, C_PAD) f32, real weights in the first num_classes columns,
             zeros in the padded columns.
      b_pad: (1, C_PAD) f32, real bias in the first num_classes columns,
             -1e30 in the padded columns (masks them out of the log-softmax).
    """
    num_classes = conv_w.shape[0]
    c_pad = max(128, pl.cdiv(num_classes, 128) * 128)
    w_flat = conv_w.reshape(num_classes, K_RAW).T.astype(jnp.float32)   # (368, C)
    w_pad = jnp.zeros((K_RAW, c_pad), jnp.float32).at[:, :num_classes].set(w_flat)
    b_pad = jnp.full((1, c_pad), NEG_MASK, jnp.float32)
    b_pad = b_pad.at[0, :num_classes].set(conv_b.astype(jnp.float32))
    return w_pad, b_pad


@functools.partial(jax.jit, static_argnames=("num_classes",))
def classifier_forward(x, w_pad, b_pad, num_classes):
    """x: (B, 16, 1, 23) NCHW (f32 or bf16)
       w_pad, b_pad: from prepare_classifier_params
       returns: (B, num_classes) log-probabilities (== torch output after squeezes)
    """
    B = x.shape[0]
    c_pad = w_pad.shape[1]

    # Free, copy-less flatten of the NCHW feature map.
    x_flat = x.reshape(B, K_RAW)

    # Block == full batch dim when small (always legal); otherwise TB_MAX with
    # Pallas-masked ragged edge block (no wrapper-side padding / extra HBM pass).
    tb = B if B <= TB_MAX else TB_MAX
    grid = (pl.cdiv(B, tb),)

    out = pl.pallas_call(
        classifier_kernel,
        out_shape=jax.ShapeDtypeStruct((B, c_pad), jnp.float32),
        grid_spec=pltpu.PrefetchScalarGridSpec(
            num_scalar_prefetch=0,
            grid=grid,
            in_specs=[
                pl.BlockSpec((tb, K_RAW), lambda i: (i, 0)),      # streamed x tile
                pl.BlockSpec((K_RAW, c_pad), lambda i: (0, 0)),   # resident weights
                pl.BlockSpec((1, c_pad), lambda i: (0, 0)),       # resident bias/mask
            ],
            out_specs=pl.BlockSpec((tb, c_pad), lambda i: (i, 0)),  # lane-dense out
        ),
        compiler_params=pltpu.CompilerParams(
            dimension_semantics=("parallel",),      # batch axis independent
            vmem_limit_bytes=32 * 1024 * 1024,      # headroom on v5e (16 MiB default)
        ),
    )(x_flat, w_pad, b_pad)

    # Drop padded classes (and any masked edge-block rows never exist: out has B rows).
    return out[:B, :num_classes]


if __name__ == "__main__":
    num_classes = 4
    B = 2

    key = jax.random.PRNGKey(0)
    kx, kw, kb = jax.random.split(key, 3)

    # Deterministic synthetic parameters (Conv2d(16, num_classes, (1, 23)))
    fan_in = 16 * 1 * 23
    bound = 1.0 / (fan_in ** 0.5)
    conv_w = jax.random.uniform(kw, (num_classes, 16, 1, 23),
                                minval=-bound, maxval=bound, dtype=jnp.float32)
    conv_b = jax.random.uniform(kb, (num_classes,),
                                minval=-bound, maxval=bound, dtype=jnp.float32)

    # Input consistent with the module: NCHW = (B, 16, 1, 23)
    x = jax.random.normal(kx, (B, 16, 1, 23), dtype=jnp.float32)

    # One-time parameter prep (hoisted out of the forward path)
    w_pad, b_pad = prepare_classifier_params(conv_w, conv_b)

    out = classifier_forward(x, w_pad, b_pad, num_classes)
    out = jax.block_until_ready(out)

    # Pure-JAX reference: conv(1x23, single valid position) == dense + log-softmax
    ref_logits = x.reshape(B, -1) @ conv_w.reshape(num_classes, -1).T + conv_b
    ref = jax.nn.log_softmax(ref_logits, axis=-1)

    row_sums = jnp.sum(jnp.exp(out), axis=-1)
    assert out.shape == (B, num_classes)
    assert bool(jnp.all(jnp.abs(row_sums - 1.0) < 1e-4))
    assert bool(jnp.allclose(out, ref, atol=1e-5, rtol=1e-5))

    print("KERNEL_OK")
</pallas_src>

<mosaic_0001>
module attributes {stable_mosaic.version = 11 : i64} {
  func.func @classifier_kernel(%arg0: i32, %arg1: memref<2x368xf32, #tpu.memory_space<vmem>>, %arg2: memref<368x128xf32, #tpu.memory_space<vmem>>, %arg3: memref<1x128xf32, #tpu.memory_space<vmem>>, %arg4: memref<2x128xf32, #tpu.memory_space<vmem>>) attributes {dimension_semantics = [#tpu.dimension_semantics<parallel>], iteration_bounds = array<i64: 1>, scalar_prefetch = 0 : i64, scratch_operands = 0 : i64, tpu.core_type = #tpu.core_type<tc>, window_params = [{transform_indices = @transform_0, window_bounds = array<i64: 2, 368>}, {pipeline_mode = #tpu.pipeline_mode<synchronous>, transform_indices = @transform_1, window_bounds = array<i64: 368, 128>}, {pipeline_mode = #tpu.pipeline_mode<synchronous>, transform_indices = @transform_2, window_bounds = array<i64: 1, 128>}, {transform_indices = @transform_3, window_bounds = array<i64: 2, 128>}]} {
    %c0 = arith.constant 0 : index
    %c0_0 = arith.constant 0 : index
    %0 = vector.load %arg1[%c0, %c0_0] : memref<2x368xf32, #tpu.memory_space<vmem>>, vector<2x368xf32>
    %c0_1 = arith.constant 0 : index
    %c0_2 = arith.constant 0 : index
    %1 = vector.load %arg2[%c0_1, %c0_2] : memref<368x128xf32, #tpu.memory_space<vmem>>, vector<368x128xf32>
    %cst = arith.constant dense<0.000000e+00> : vector<2x128xf32>
    %2 = tpu.matmul %0, %1, %cst {dimension_numbers = #tpu.dot_dimension_numbers<[1], [0], [0], [1], [0, 0, 1, 1], [], []>} : vector<2x368xf32>, vector<368x128xf32>, vector<2x128xf32> -> vector<2x128xf32>
    %c0_3 = arith.constant 0 : index
    %c0_4 = arith.constant 0 : index
    %3 = vector.load %arg3[%c0_3, %c0_4] : memref<1x128xf32, #tpu.memory_space<vmem>>, vector<1x128xf32>
    %4 = vector.broadcast %3 : vector<1x128xf32> to vector<2x128xf32>
    %5 = arith.addf %2, %4 : vector<2x128xf32>
    %cst_5 = arith.constant dense<0xFF800000> : vector<2xf32>
    %6 = vector.multi_reduction <maximumf>, %5, %cst_5 [1] : vector<2x128xf32> to vector<2xf32>
    %7 = vector.shape_cast %6 : vector<2xf32> to vector<2x1xf32>
    %8 = vector.broadcast %7 : vector<2x1xf32> to vector<2x128xf32>
    %9 = arith.subf %5, %8 : vector<2x128xf32>
    %10 = math.exp %9 : vector<2x128xf32>
    %cst_6 = arith.constant dense<0.000000e+00> : vector<2xf32>
    %11 = vector.multi_reduction <add>, %10, %cst_6 [1] : vector<2x128xf32> to vector<2xf32>
    %12 = vector.shape_cast %11 : vector<2xf32> to vector<2x1xf32>
    %13 = math.log %12 : vector<2x1xf32>
    %14 = vector.broadcast %13 : vector<2x1xf32> to vector<2x128xf32>
    %15 = arith.subf %9, %14 : vector<2x128xf32>
    %c0_7 = arith.constant 0 : index
    %c0_8 = arith.constant 0 : index
    %16 = vector.load %arg4[%c0_7, %c0_8] : memref<2x128xf32, #tpu.memory_space<vmem>>, vector<2x128xf32>
    tpu.vector_store %arg4[%c0_7, %c0_8], %15 {strides = array<i32>} : memref<2x128xf32, #tpu.memory_space<vmem>>, vector<2x128xf32>,
    return
  }
  func.func @transform_0(%arg0: i32) -> (i32, i32) {
    %c0_i32 = arith.constant 0 : i32
    %c0_i32_0 = arith.constant 0 : i32
    return %arg0, %c0_i32 : i32, i32
  }
  func.func @transform_1(%arg0: i32) -> (i32, i32) {
    %c0_i32 = arith.constant 0 : i32
    %c0_i32_0 = arith.constant 0 : i32
    %c0_i32_1 = arith.constant 0 : i32
    return %c0_i32, %c0_i32_0 : i32, i32
  }
  func.func @transform_2(%arg0: i32) -> (i32, i32) {
    %c0_i32 = arith.constant 0 : i32
    %c0_i32_0 = arith.constant 0 : i32
    %c0_i32_1 = arith.constant 0 : i32
    return %c0_i32, %c0_i32_0 : i32, i32
  }
  func.func @transform_3(%arg0: i32) -> (i32, i32) {
    %c0_i32 = arith.constant 0 : i32
    %c0_i32_0 = arith.constant 0 : i32
    return %arg0, %c0_i32 : i32, i32
  }
}

</mosaic_0001>

<llo_original>
// kernel: classifier_forward.1
$region0: #{classifier_forward.1}
  #allocation0 [shape = 'u32[]', space=smem, size = 0x4, offset = 0x4, fixed_abs, tag = 'smem constant byte address 0x4 - core index']
  #allocation1 [shape = 'u32[144,128]{1,0:T(1,128)}', space=vmem, size = 0x12000, scoped, tag = 'internal scratch']
  %s0 = inlined_call_operand.vmem [shape: f32[2,368], index: 0, kind: input, shape index: {}]
  %s1 = inlined_call_operand.hbm [shape: f32[368,128], index: 1, kind: input, shape index: {}]
  %s2 = inlined_call_operand.vmem [shape: f32[1,128], index: 2, kind: input, shape index: {}]
  %s3 = inlined_call_operand.hbm [shape: f32[2,128], index: 3, kind: output, shape index: {}]
  %s4 = sld [smem:[#allocation0]]
  $region26: #{classifier_forward.1} parent=0
    _
  %s6 = ssub.s32 1, %s4
  %s7 = scalar_select 0, %s6, %s4
  $region1: #{classifier_forward.1} parent=0
    #allocation2 [shape = 'u8[188416]{0}', space=vmem, size = 0x2e000, scoped, tag = 'input window, operand 1, single buffered']
    #allocation3 [shape = 's32[1]{0}', space=sflag, size = 0x4, scoped, tag = 'scoped memory for classifier_forward.1']
    #allocation4 [shape = 's32[1]{0}', space=sflag, size = 0x4, scoped, tag = 'scoped memory for classifier_forward.1']
    #allocation5 [shape = 'u8[1024]{0}', space=vmem, size = 0x400, scoped, tag = 'output window, operand 0, single buffered']
    %8 = vsyncpa [#allocation3], 0
    %9 = vsyncpa [#allocation4], 0
    // Predicated region
    $region2: #{classifier_forward.1} parent=1 // pred_check
      _
    $region3: #{classifier_forward.1} parent=1 // pred_check_branch
      %11 = sbr.rel (0) target = $region5
    $region4: #{classifier_forward.1} parent=1 // pred_region
      _
    $region5: #{classifier_forward.1} parent=1 // pred_fallthru
      _
    // Predicated region
    $region6: #{classifier_forward.1} parent=1 // pred_check
      _
    $region7: #{classifier_forward.1} parent=1 // pred_check_branch
      %13 = sbr.rel (0) target = $region9
    $region8: #{classifier_forward.1} parent=1 // pred_region
      %s15 = ssub.s32 5888, 5888
      %16 = vsyncadd [#allocation3], %s15
      %s17 = sshll.u32 [#allocation2], 4
      %s18 = int_to_ptr.vmem [resolvable:$true] %s17
      %23 = dma.hbm_to_vmem [thread:$0]  %s1, 5888, %s18, [#allocation3], 128, 128, 8
    $region9: #{classifier_forward.1} parent=1 // pred_fallthru
      _
    // Predicated region
    $region10: #{classifier_forward.1} parent=1 // pred_check
      _
    $region11: #{classifier_forward.1} parent=1 // pred_check_branch
      %25 = sbr.rel (0) target = $region13
    $region12: #{classifier_forward.1} parent=1 // pred_region
      _
    $region13: #{classifier_forward.1} parent=1 // pred_fallthru
      _
    // Predicated region
    $region14: #{classifier_forward.1} parent=1 // pred_check
      _
    $region15: #{classifier_forward.1} parent=1 // pred_check_branch
      %27 = sbr.rel (0) target = $region17
    $region16: #{classifier_forward.1} parent=1 // pred_region
      %28 = dma.done [#allocation3], 5888
    $region17: #{classifier_forward.1} parent=1 // pred_fallthru
      _
    %v29 = vld [vmem:[%s0] sm:$0x3f]
    %v30 = vld [vmem:[#allocation2] sm:$0xff]
    %v31 = vld [vmem:[#allocation2 + $0x8] sm:$0xff]
    %v32 = vld [vmem:[#allocation2 + $0x10] sm:$0xff]
    %v33 = vld [vmem:[#allocation2 + $0x18] sm:$0xff]
    %v34 = vld [vmem:[#allocation2 + $0x20] sm:$0xff]
    %v35 = vld [vmem:[#allocation2 + $0x28] sm:$0xff]
    %v36 = vld [vmem:[#allocation2 + $0x30] sm:$0xff]
    %v37 = vld [vmem:[#allocation2 + $0x38] sm:$0xff]
    %v38 = vld [vmem:[#allocation2 + $0x40] sm:$0xff]
    %v39 = vld [vmem:[#allocation2 + $0x48] sm:$0xff]
    %v40 = vld [vmem:[#allocation2 + $0x50] sm:$0xff]
    %v41 = vld [vmem:[#allocation2 + $0x58] sm:$0xff]
    %v42 = vld [vmem:[#allocation2 + $0x60] sm:$0xff]
    %v43 = vld [vmem:[#allocation2 + $0x68] sm:$0xff]
    %v44 = vld [vmem:[#allocation2 + $0x70] sm:$0xff]
    %v45 = vld [vmem:[#allocation2 + $0x78] sm:$0xff]
    %v46 = vld [vmem:[#allocation2 + $0x80] sm:$0xff]
    %v47 = vld [vmem:[#allocation2 + $0x88] sm:$0xff]
    %v48 = vld [vmem:[#allocation2 + $0x90] sm:$0xff]
    %v49 = vld [vmem:[#allocation2 + $0x98] sm:$0xff]
    %v50 = vld [vmem:[#allocation2 + $0xa0] sm:$0xff]
    %v51 = vld [vmem:[#allocation2 + $0xa8] sm:$0xff]
    %v52 = vld [vmem:[#allocation2 + $0xb0] sm:$0xff]
    %v53 = vld [vmem:[#allocation2 + $0xb8] sm:$0xff]
    %v54 = vld [vmem:[#allocation2 + $0xc0] sm:$0xff]
    %v55 = vld [vmem:[#allocation2 + $0xc8] sm:$0xff]
    %v56 = vld [vmem:[#allocation2 + $0xd0] sm:$0xff]
    %v57 = vld [vmem:[#allocation2 + $0xd8] sm:$0xff]
    %v58 = vld [vmem:[#allocation2 + $0xe0] sm:$0xff]
    %v59 = vld [vmem:[#allocation2 + $0xe8] sm:$0xff]
    %v60 = vld [vmem:[#allocation2 + $0xf0] sm:$0xff]
    %v61 = vld [vmem:[#allocation2 + $0xf8] sm:$0xff]
    %v62 = vld [vmem:[#allocation2 + $0x100] sm:$0xff]
    %v63 = vld [vmem:[#allocation2 + $0x108] sm:$0xff]
    %v64 = vld [vmem:[#allocation2 + $0x110] sm:$0xff]
    %v65 = vld [vmem:[#allocation2 + $0x118] sm:$0xff]
    %v66 = vld [vmem:[#allocation2 + $0x120] sm:$0xff]
    %v67 = vld [vmem:[#allocation2 + $0x128] sm:$0xff]
    %v68 = vld [vmem:[#allocation2 + $0x130] sm:$0xff]
    %v69 = vld [vmem:[#allocation2 + $0x138] sm:$0xff]
    %v70 = vld [vmem:[#allocation2 + $0x140] sm:$0xff]
    %v71 = vld [vmem:[#allocation2 + $0x148] sm:$0xff]
    %v72 = vld [vmem:[#allocation2 + $0x150] sm:$0xff]
    %v73 = vld [vmem:[#allocation2 + $0x158] sm:$0xff]
    %v74 = vld [vmem:[#allocation2 + $0x160] sm:$0xff]
    %v75 = vld [vmem:[#allocation2 + $0x168] sm:$0xff]
    %v76 = vld [vmem:[%s2] sm:$0x1]
    %v78 = vlaneseq
    %v79 = vshrl.u32 %v78, 7
    %v80 = vsub.s32 0, %v79
    %v81 = vrot.slane %v76, %v80
    %v84 = vcombine.high %v29, %v29
    %v86 = vunpack.c.l.s4 1983009808
    %v87 = vunpack.c.0.s8 %v86
    %v88 = vlaneseq
    %v89 = vshrl.u32 %v88, 7
    %v90 = vsub.s32 %v87, %v89
    %v91 = vrot.slane %v29, %v90
    %v93 = vunpack.c.l.s4 1983009808
    %v94 = vunpack.c.0.s8 %v93
    %v95 = vlaneseq
    %v96 = vshrl.u32 %v95, 7
    %v97 = vsub.s32 %v94, %v96
    %v98 = vrot.slane %v84, %v97
    %v99 = vcombine.high %v91, %v91
    %vm102 = vcmask 916480
    %v103 = vsel %vm102, %v98, 0
    %105 = vmatprep.subr.mxu0 0.0
    %106 = vmatpush1.msra.mxu0 %v30
    %107 = vmatprep.subr.mxu0 0.0
    %108 = vmatpush1.msra.mxu0 %v31
    %109 = vmatprep.subr.mxu0 0.0
    %110 = vmatpush1.msra.mxu0 %v32
    %111 = vmatprep.subr.mxu0 0.0
    %112 = vmatpush1.msra.mxu0 %v33
    %113 = vmatprep.subr.mxu0 0.0
    %114 = vmatpush1.msra.mxu0 %v34
    %115 = vmatprep.subr.mxu0 0.0
    %116 = vmatpush1.msra.mxu0 %v35
    %117 = vmatprep.subr.mxu0 0.0
    %118 = vmatpush1.msra.mxu0 %v36
    %119 = vmatprep.subr.mxu0 0.0
    %120 = vmatpush1.msra.mxu0 %v37
    %121 = vmatprep.subr.mxu0 0.0
    %122 = vmatpush1.msra.mxu0 %v38
    %123 = vmatprep.subr.mxu0 0.0
    %124 = vmatpush1.msra.mxu0 %v39
    %125 = vmatprep.subr.mxu0 0.0
    %126 = vmatpush1.msra.mxu0 %v40
    %127 = vmatprep.subr.mxu0 0.0
    %128 = vmatpush1.msra.mxu0 %v41
    %129 = vmatprep.subr.mxu0 0.0
    %130 = vmatpush1.msra.mxu0 %v42
    %131 = vmatprep.subr.mxu0 0.0
    %132 = vmatpush1.msra.mxu0 %v43
    %133 = vmatprep.subr.mxu0 0.0
    %134 = vmatpush1.msra.mxu0 %v44
    %135 = vmatprep.subr.mxu0 0.0
    %136 = vmatpush1.msra.mxu0 %v45
    %137 = vmatprep.subr.mxu0 0.0
    %138 = vmatpush1.msra.mxu0 %v46
    %139 = vmatprep.subr.mxu0 0.0
    %140 = vmatpush1.msra.mxu0 %v47
    %141 = vmatprep.subr.mxu0 0.0
    %142 = vmatpush1.msra.mxu0 %v48
    %143 = vmatprep.subr.mxu0 0.0
    %144 = vmatpush1.msra.mxu0 %v49
    %145 = vmatprep.subr.mxu0 0.0
    %146 = vmatpush1.msra.mxu0 %v50
    %147 = vmatprep.subr.mxu0 0.0
    %148 = vmatpush1.msra.mxu0 %v51
    %149 = vmatprep.subr.mxu0 0.0
    %150 = vmatpush1.msra.mxu0 %v52
    %151 = vmatprep.subr.mxu0 0.0
    %152 = vmatpush1.msra.mxu0 %v53
    %153 = vmatprep.subr.mxu0 0.0
    %154 = vmatpush1.msra.mxu0 %v54
    %155 = vmatprep.subr.mxu0 0.0
    %156 = vmatpush1.msra.mxu0 %v55
    %157 = vmatprep.subr.mxu0 0.0
    %158 = vmatpush1.msra.mxu0 %v56
    %159 = vmatprep.subr.mxu0 0.0
    %160 = vmatpush1.msra.mxu0 %v57
    %161 = vmatprep.subr.mxu0 0.0
    %162 = vmatpush1.msra.mxu0 %v58
    %163 = vmatprep.subr.mxu0 0.0
    %164 = vmatpush1.msra.mxu0 %v59
    %165 = vmatprep.subr.mxu0 0.0
    %166 = vmatpush1.msra.mxu0 %v60
    %167 = vmatprep.subr.mxu0 0.0
    %168 = vmatpush1.msra.mxu0 %v61
    %169 = vmatprep.mubr.f32.mxu0 %v99
    %170 = vmatmul.mubr.f32.gmra.mrb[0].mxu0 %v91
    %v171 = vpop.f32.mrb[0].mxu0
    %v172 = vadd.f32 %v81, %v171
    %v173 = vpop.f32.mrb[0].mxu0
    %174 = vdwg.mxu0
    %175 = vmatprep.subr.mxu0 0.0
    %176 = vmatpush1.msra.mxu0 %v62
    %177 = vmatprep.subr.mxu0 0.0
    %178 = vmatpush1.msra.mxu0 %v63
    %179 = vmatprep.subr.mxu0 0.0
    %180 = vmatpush1.msra.mxu0 %v64
    %181 = vmatprep.subr.mxu0 0.0
    %182 = vmatpush1.msra.mxu0 %v65
    %183 = vmatprep.subr.mxu0 0.0
    %184 = vmatpush1.msra.mxu0 %v66
    %185 = vmatprep.subr.mxu0 0.0
    %186 = vmatpush1.msra.mxu0 %v67
    %187 = vmatprep.subr.mxu0 0.0
    %188 = vmatpush1.msra.mxu0 %v68
    %189 = vmatprep.subr.mxu0 0.0
    %190 = vmatpush1.msra.mxu0 %v69
    %191 = vmatprep.subr.mxu0 0.0
    %192 = vmatpush1.msra.mxu0 %v70
    %193 = vmatprep.subr.mxu0 0.0
    %194 = vmatpush1.msra.mxu0 %v71
    %195 = vmatprep.subr.mxu0 0.0
    %196 = vmatpush1.msra.mxu0 %v72
    %197 = vmatprep.subr.mxu0 0.0
    %198 = vmatpush1.msra.mxu0 %v73
    %199 = vmatprep.subr.mxu0 0.0
    %200 = vmatpush1.msra.mxu0 %v74
    %201 = vmatprep.subr.mxu0 0.0
    %202 = vmatpush1.msra.mxu0 %v75
    %203 = vmatprep.subr.mxu0 0.0
    %204 = vmatpush1.msra.mxu0 0.0
    %205 = vmatprep.subr.mxu0 0.0
    %206 = vmatpush1.msra.mxu0 0.0
    %207 = vmatprep.subr.mxu0 0.0
    %208 = vmatpush1.msra.mxu0 0.0
    %209 = vmatprep.subr.mxu0 0.0
    %210 = vmatpush1.msra.mxu0 0.0
    %211 = vmatprep.subr.mxu0 0.0
    %212 = vmatpush1.msra.mxu0 0.0
    %213 = vmatprep.subr.mxu0 0.0
    %214 = vmatpush1.msra.mxu0 0.0
    %215 = vmatprep.subr.mxu0 0.0
    %216 = vmatpush1.msra.mxu0 0.0
    %217 = vmatprep.subr.mxu0 0.0
    %218 = vmatpush1.msra.mxu0 0.0
    %219 = vmatprep.subr.mxu0 0.0
    %220 = vmatpush1.msra.mxu0 0.0
    %221 = vmatprep.subr.mxu0 0.0
    %222 = vmatpush1.msra.mxu0 0.0
    %223 = vmatprep.subr.mxu0 0.0
    %224 = vmatpush1.msra.mxu0 0.0
    %225 = vmatprep.subr.mxu0 0.0
    %226 = vmatpush1.msra.mxu0 0.0
    %227 = vmatprep.subr.mxu0 0.0
    %228 = vmatpush1.msra.mxu0 0.0
    %229 = vmatprep.subr.mxu0 0.0
    %230 = vmatpush1.msra.mxu0 0.0
    %231 = vmatprep.subr.mxu0 0.0
    %232 = vmatpush1.msra.mxu0 0.0
    %233 = vmatprep.subr.mxu0 0.0
    %234 = vmatpush1.msra.mxu0 0.0
    %235 = vmatprep.subr.mxu0 0.0
    %236 = vmatpush1.msra.mxu0 0.0
    %237 = vmatprep.subr.mxu0 0.0
    %238 = vmatpush1.msra.mxu0 0.0
    %239 = vmatprep.mubr.f32.mxu0 0.0
    %240 = vmatmul.mubr.f32.gmra.mrb[0].mxu0 %v103
    %v241 = vpop.f32.mrb[0].mxu0
    %v242 = vadd.f32 %v172, %v241
    %v243 = vpop.f32.mrb[0].mxu0
    %244 = vdwg.mxu0
    %vm245 = vcmask 1041408
    %v246 = vsel %vm245, %v242, -inf
    %247 = vmax.xlane.f32.xlu0 %v246
    %v248 = vpop.xlane.xlu0 %247
    %v249 = vsub.f32 %v242, %v248
    %v250 = vmul.f32 %v249, 1.442695
    %v251 = vpow.pop %v250
    %v252 = vsel %vm245, %v251, 0.0
    %253 = vadd.xlane.f32.xlu0 %v252
    %v254 = vpop.xlane.xlu0 %253
    %v255 = vlog2.pop %v254
    %v256 = vmul.f32 %v255, 0.6931472
    %v257 = vsub.f32 %v249, %v256
    %258 = vst [vmem:[#allocation5] sm:$0x3] %v257
    // Predicated region
    $region18: #{classifier_forward.1} parent=1 // pred_check
      _
    $region19: #{classifier_forward.1} parent=1 // pred_check_branch
      %260 = sbr.rel (0) target = $region21
    $region20: #{classifier_forward.1} parent=1 // pred_region
      %s262 = ssub.s32 32, 32
      %263 = vsyncadd [#allocation4], %s262
      %s265 = sshll.u32 [#allocation5], 4
      %s266 = int_to_ptr.vmem [resolvable:$true] %s265
      %268 = dma.vmem_to_hbm [thread:$0]  %s266, 32, %s3, [#allocation4]
    $region21: #{classifier_forward.1} parent=1 // pred_fallthru
      _
    // Predicated region
    $region22: #{classifier_forward.1} parent=1 // pred_check
      _
    $region23: #{classifier_forward.1} parent=1 // pred_check_branch
      %270 = sbr.rel (0) target = $region25
    $region24: #{classifier_forward.1} parent=1 // pred_region
      %271 = dma.done [#allocation4], 32
    $region25: #{classifier_forward.1} parent=1 // pred_fallthru
      _
    %272 = vsyncpa [#allocation3], 1
    %273 = vsyncpa [#allocation4], 1

</llo_original>
